<compile_context>
chip_gen: v5e
topology: v5e:2x2
jax: 0.10.0
libtpu: 0.0.40
codegen_flags: <defaults>
</compile_context>

<pallas_src>
import functools

import jax
import jax.numpy as jnp
from jax import lax
from jax.experimental import pallas as pl
from jax.experimental.pallas import tpu as pltpu


def _round_up(x, m):
    return ((x + m - 1) // m) * m


def _name_rnn_kernel(maxlen_ref, x_ref, wih_ref, whh_ref, gib_ref, bhn_ref,
                     fcw_ref, fcb_ref, lens_ref, out_ref,
                     gi_ref, h_ref, fnl_ref, *, hp):
    """One batch block: input projections + GRU recurrence + output Linear.

    maxlen_ref : (nb,)        i32 SMEM  per-block max(lens) (scalar prefetch)
    x_ref      : (1, T*TB, Hp) cdt      embedded inputs, time-major in the block
    wih_ref    : (Hp, 3Hp)    cdt       input->hidden weights, gate slabs lane-padded
    whh_ref    : (Hp, 3Hp)    cdt       hidden->hidden weights
    gib_ref    : (1, 3Hp)     f32       b_ih with b_hh[r], b_hh[z] folded in
    bhn_ref    : (1, Hp)      f32       b_hh of the n gate (multiplied by r)
    fcw_ref    : (Hp, No)     cdt
    fcb_ref    : (1, No)      f32
    lens_ref   : (TB, 1)      i32       valid length per sequence (clamped to [1, T])
    out_ref    : (TB, No)     f32
    gi_ref     : (T*TB, 3Hp)  cdt scratch  precomputed input-side gate pre-activations
    h_ref/fnl_ref : (TB, Hp)  f32 scratch  hidden state / captured final hidden
    """
    tb = lens_ref.shape[0]
    cdt = whh_ref.dtype                       # MXU compute dtype (bf16 or f32)

    # Throughput phase (off the serial chain): input-side projections for ALL
    # timesteps in one MXU matmul; stored in the compute dtype.
    gi = jnp.dot(x_ref[0], wih_ref[...], preferred_element_type=jnp.float32)
    gi_ref[...] = (gi + gib_ref[...]).astype(cdt)

    # Loop-invariant broadcasts hoisted once (JAX does not CSE broadcast_in_dim).
    bhn_b = jnp.broadcast_to(bhn_ref[...], (tb, hp))
    lens_b = jnp.broadcast_to(lens_ref[...], (tb, hp))

    # _reset_hidden: zero initial state.  Scratch persists across grid steps, so
    # re-initialize for every batch block.
    h_ref[...] = jnp.zeros((tb, hp), jnp.float32)
    fnl_ref[...] = jnp.zeros((tb, hp), jnp.float32)

    # Serial recurrence with ragged-length early exit: only max(lens) of the T
    # steps run for this (length-sorted) batch block.
    max_len = maxlen_ref[pl.program_id(0)]

    @pl.loop(0, max_len)
    def _(t):
        row = pl.multiple_of(t * tb, 8)                 # tb % 8 == 0 -> tile-aligned
        gi_t = gi_ref[pl.ds(row, tb), :].astype(jnp.float32)        # (TB, 3Hp)
        h = h_ref[...]
        gh = jnp.dot(h.astype(cdt), whh_ref[...],
                     preferred_element_type=jnp.float32)            # (TB, 3Hp)
        # Gate slabs start on 128-lane boundaries (Hp % 128 == 0): no relayout.
        r = jax.nn.sigmoid(gi_t[:, :hp] + gh[:, :hp])
        z = jax.nn.sigmoid(gi_t[:, hp:2 * hp] + gh[:, hp:2 * hp])
        n = jnp.tanh(gi_t[:, 2 * hp:] + r * (gh[:, 2 * hp:] + bhn_b))
        h_new = (1.0 - z) * n + z * h
        h_ref[...] = h_new
        # Capture the hidden state at each sequence's last valid timestep.
        fnl_ref[...] = jnp.where(lens_b == (t + 1), h_new, fnl_ref[...])

    out_ref[...] = (
        jnp.dot(fnl_ref[...].astype(cdt), fcw_ref[...],
                preferred_element_type=jnp.float32)
        + fcb_ref[...]
    )


def init_params(key, n_pos_chars, n_hidden, n_outputs):
    """Deterministic parameter init matching nn.Embedding / nn.GRU / nn.Linear shapes."""
    ks = jax.random.split(key, 7)
    s = 1.0 / jnp.sqrt(jnp.float32(n_hidden))
    return {
        # nn.Embedding(n_pos_chars, n_hidden)
        "embed": jax.random.normal(ks[0], (n_pos_chars, n_hidden), jnp.float32),
        # nn.GRU weight_ih_l0 / weight_hh_l0: (3H, H), gate order (r, z, n)
        "w_ih": jax.random.uniform(ks[1], (3 * n_hidden, n_hidden), jnp.float32, -s, s),
        "w_hh": jax.random.uniform(ks[2], (3 * n_hidden, n_hidden), jnp.float32, -s, s),
        "b_ih": jax.random.uniform(ks[3], (3 * n_hidden,), jnp.float32, -s, s),
        "b_hh": jax.random.uniform(ks[4], (3 * n_hidden,), jnp.float32, -s, s),
        # nn.Linear(n_hidden, n_outputs)
        "fc_w": jax.random.uniform(ks[5], (n_outputs, n_hidden), jnp.float32, -s, s),
        "fc_b": jax.random.uniform(ks[6], (n_outputs,), jnp.float32, -s, s),
    }


@functools.partial(jax.jit, static_argnames=("compute_dtype", "batch_block",
                                              "sort_by_length"))
def name_rnn_forward(params, input_ids, lens=None, *,
                     compute_dtype=jnp.bfloat16, batch_block=None,
                     sort_by_length=True):
    """Pallas forward.  input_ids: int32 (B, T); lens: int32 (B,) or None."""
    B, T = input_ids.shape
    H = params["embed"].shape[1]
    n_out = params["fc_w"].shape[0]
    Hp = _round_up(H, 128)        # gate slabs padded to 128 lanes (free when H % 128 == 0)
    No = _round_up(n_out, 128)    # lane-dense output stores (unmasked vst)

    if lens is None:
        # lens=None path of the module == hidden state after the last timestep.
        lens = jnp.full((B,), T, jnp.int32)
    # Guard lens==0 / lens>T so padding rows can't produce garbage silently.
    lens = jnp.clip(lens.astype(jnp.int32), 1, T)

    # --- batch blocking: 8-aligned blocks big enough to fill the MXU M dim;
    # nb > 1 lets the "parallel" grid axis shard blocks across v7x's 2 TCs.
    if batch_block is None:
        batch_block = min(256, _round_up(B, 8))
    batch_block = _round_up(batch_block, 8)
    B_pad = _round_up(B, batch_block)
    nb = B_pad // batch_block
    tb = batch_block

    pad = B_pad - B
    ids_p = jnp.pad(input_ids, ((0, pad), (0, 0)))          # pad with id 0 (valid index)
    lens_p = jnp.pad(lens, (0, pad), constant_values=1)      # padded rows run 1 step

    # Sort by length (descending) so sequences of similar length share a block;
    # the kernel then skips dead timesteps via the per-block max length.
    perm = jnp.argsort(-lens_p) if sort_by_length else jnp.arange(B_pad)
    inv_perm = jnp.argsort(perm)
    ids_p = ids_p[perm]
    lens_p = lens_p[perm]
    block_maxlen = lens_p.reshape(nb, tb).max(axis=1).astype(jnp.int32)

    # --- embedding gather directly in time-major order, hidden padded to Hp lanes.
    embed_p = jnp.zeros((params["embed"].shape[0], Hp), jnp.float32)
    embed_p = embed_p.at[:, :H].set(params["embed"])
    x_tm = jnp.take(embed_p, ids_p.T, axis=0)                            # (T, B_pad, Hp)
    x_blk = (x_tm.reshape(T, nb, tb, Hp)
                 .transpose(1, 0, 2, 3)
                 .reshape(nb, T * tb, Hp)
                 .astype(compute_dtype))                                 # (nb, T*tb, Hp)

    # --- GRU weight packing: x @ W with ONE (Hp, 3Hp) matrix per side, each gate
    # slab (r,z,n) starting on a 128-lane boundary.  Zero padding keeps padded
    # hidden lanes identically zero -> exact torch.nn.GRU semantics.
    def pack_gru(w):                                   # torch (3H, H), gates (r,z,n)
        w3 = jnp.transpose(w.reshape(3, H, H), (2, 0, 1))                # (H_in, 3, H_out)
        full = jnp.zeros((Hp, 3, Hp), jnp.float32).at[:H, :, :H].set(w3)
        return full.reshape(Hp, 3 * Hp).astype(compute_dtype)

    w_ih_cat = pack_gru(params["w_ih"])
    w_hh_cat = pack_gru(params["w_hh"])

    b_ih = params["b_ih"].reshape(3, H)
    b_hh = params["b_hh"].reshape(3, H)
    # b_hh of the r/z gates folds into the precomputed input-side bias; b_hh of
    # the n gate stays separate (it is multiplied by r).
    gi_bias = (jnp.zeros((1, 3, Hp), jnp.float32)
               .at[0, :, :H]
               .set(jnp.stack([b_ih[0] + b_hh[0], b_ih[1] + b_hh[1], b_ih[2]]))
               .reshape(1, 3 * Hp))
    b_hn = jnp.zeros((1, Hp), jnp.float32).at[0, :H].set(b_hh[2])

    fc_w = (jnp.zeros((Hp, No), jnp.float32)
            .at[:H, :n_out].set(params["fc_w"].T).astype(compute_dtype))
    fc_b = jnp.zeros((1, No), jnp.float32).at[0, :n_out].set(params["fc_b"])
    lens2d = lens_p.reshape(B_pad, 1)

    # --- explicit VMEM budget (double-buffered inputs/outputs + scratch).
    # TODO(synk): for long T, add a time-chunk grid axis ("arbitrary") with h/fnl
    # carried in VMEM scratch so VMEM stays O(t_chunk) (v7x has only 64 MiB).
    isz = jnp.dtype(compute_dtype).itemsize
    block_in = (T * tb * Hp * isz + 2 * Hp * 3 * Hp * isz + Hp * No * isz
                + (3 * Hp + Hp + No) * 4 + tb * 128 * 4)
    block_out = tb * No * 4
    scratch_b = T * tb * 3 * Hp * isz + 2 * tb * Hp * 4
    vmem_limit = int(min(max(2 * (block_in + block_out) + scratch_b + (2 << 20),
                             16 << 20), 96 << 20))

    kernel = functools.partial(_name_rnn_kernel, hp=Hp)

    out_pad = pl.pallas_call(
        kernel,
        out_shape=jax.ShapeDtypeStruct((B_pad, No), jnp.float32),
        grid_spec=pltpu.PrefetchScalarGridSpec(
            num_scalar_prefetch=1,
            grid=(nb,),
            in_specs=[
                pl.BlockSpec((1, T * tb, Hp), lambda b, *_: (b, 0, 0)),   # x, per batch block
                pl.BlockSpec((Hp, 3 * Hp), lambda b, *_: (0, 0)),         # W_ih (concat, x @ W)
                pl.BlockSpec((Hp, 3 * Hp), lambda b, *_: (0, 0)),         # W_hh (concat, h @ W)
                pl.BlockSpec((1, 3 * Hp), lambda b, *_: (0, 0)),          # folded input-side bias
                pl.BlockSpec((1, Hp), lambda b, *_: (0, 0)),              # b_hh[n]
                pl.BlockSpec((Hp, No), lambda b, *_: (0, 0)),             # fc weight
                pl.BlockSpec((1, No), lambda b, *_: (0, 0)),              # fc bias
                pl.BlockSpec((tb, 1), lambda b, *_: (b, 0)),              # lens, per batch block
            ],
            out_specs=pl.BlockSpec((tb, No), lambda b, *_: (b, 0)),
            scratch_shapes=[
                pltpu.VMEM((T * tb, 3 * Hp), compute_dtype),   # gi (compute dtype)
                pltpu.VMEM((tb, Hp), jnp.float32),             # h
                pltpu.VMEM((tb, Hp), jnp.float32),             # fnl
            ]),
        compiler_params=pltpu.CompilerParams(
            dimension_semantics=("parallel",),     # batch blocks shard across TCs on v7x
            vmem_limit_bytes=vmem_limit),
    )(block_maxlen, x_blk, w_ih_cat, w_hh_cat, gi_bias, b_hn, fc_w, fc_b, lens2d)

    # Undo the length sort and strip batch / output-lane padding.
    return out_pad[inv_perm][:B, :n_out]


def name_rnn_reference(params, input_ids, lens, compute_dtype=jnp.float32):
    """Pure-JAX reference of NameRNN.forward (same MXU dtype as the kernel)."""
    B, T = input_ids.shape
    H = params["embed"].shape[1]
    emb = jnp.take(params["embed"], input_ids, axis=0).astype(compute_dtype)  # (B,T,H)
    w_ih = params["w_ih"].reshape(3, H, H).astype(compute_dtype)   # (r,z,n), x @ W.T
    w_hh = params["w_hh"].reshape(3, H, H).astype(compute_dtype)
    b_ih = params["b_ih"].reshape(3, 1, H).astype(jnp.float32)
    b_hh = params["b_hh"].reshape(3, 1, H).astype(jnp.float32)

    def cell(h, x_t):
        gi = jnp.einsum("bh,gkh->gbk", x_t, w_ih,
                        preferred_element_type=jnp.float32) + b_ih
        gh = jnp.einsum("bh,gkh->gbk", h.astype(compute_dtype), w_hh,
                        preferred_element_type=jnp.float32) + b_hh
        r = jax.nn.sigmoid(gi[0] + gh[0])
        z = jax.nn.sigmoid(gi[1] + gh[1])
        n = jnp.tanh(gi[2] + r * gh[2])
        h_new = (1.0 - z) * n + z * h
        return h_new, h_new

    h0 = jnp.zeros((B, H), jnp.float32)
    _, outs = lax.scan(cell, h0, jnp.transpose(emb, (1, 0, 2)))       # (T, B, H)
    fnl = jnp.transpose(outs, (1, 0, 2))[jnp.arange(B), lens - 1]     # (B, H)
    return (jnp.einsum("bh,oh->bo", fnl.astype(compute_dtype),
                       params["fc_w"].astype(compute_dtype),
                       preferred_element_type=jnp.float32)
            + params["fc_b"].astype(jnp.float32))


if __name__ == "__main__":
    # Small shapes consistent with the module: character vocab, short names.
    n_pos_chars = 30    # number of possible characters
    n_hidden = 32
    n_outputs = 8       # number of name-origin classes
    B, T = 4, 8         # batch of 4 names, padded to length 8

    key = jax.random.PRNGKey(0)
    pkey, ikey, ikey2, lkey2 = jax.random.split(key, 4)
    params = init_params(pkey, n_pos_chars, n_hidden, n_outputs)

    input_ids = jax.random.randint(ikey, (B, T), 0, n_pos_chars, dtype=jnp.int32)
    lens = jnp.array([8, 5, 7, 3], dtype=jnp.int32)   # per-name valid lengths
    full_lens = jnp.full((B,), T, jnp.int32)

    # f32 MXU path: tight check (covers both the lens=None and lens branches).
    out_f32_nolens = name_rnn_forward(params, input_ids, None,
                                      compute_dtype=jnp.float32)
    out_f32_lens = name_rnn_forward(params, input_ids, lens,
                                    compute_dtype=jnp.float32)
    # Default bf16 MXU path (bf16 gi scratch).
    out_bf16_lens = name_rnn_forward(params, input_ids, lens)

    # Larger ragged batch: exercises multiple batch blocks (nb=2), length sort,
    # per-block max-len early exit, and batch padding removal.
    B2 = 16
    input_ids2 = jax.random.randint(ikey2, (B2, T), 0, n_pos_chars, dtype=jnp.int32)
    lens2 = jax.random.randint(lkey2, (B2,), 1, T + 1, dtype=jnp.int32)
    out_f32_big = name_rnn_forward(params, input_ids2, lens2,
                                   compute_dtype=jnp.float32, batch_block=8)

    jax.block_until_ready((out_f32_nolens, out_f32_lens, out_bf16_lens, out_f32_big))

    ref_f32_nolens = name_rnn_reference(params, input_ids, full_lens, jnp.float32)
    ref_f32_lens = name_rnn_reference(params, input_ids, lens, jnp.float32)
    ref_bf16_lens = name_rnn_reference(params, input_ids, lens, jnp.bfloat16)
    ref_f32_big = name_rnn_reference(params, input_ids2, lens2, jnp.float32)

    assert out_f32_nolens.shape == (B, n_outputs)
    assert out_bf16_lens.shape == (B, n_outputs)
    assert out_f32_big.shape == (B2, n_outputs)
    assert jnp.allclose(out_f32_nolens, ref_f32_nolens, atol=1e-4, rtol=1e-4)
    assert jnp.allclose(out_f32_lens, ref_f32_lens, atol=1e-4, rtol=1e-4)
    assert jnp.allclose(out_f32_big, ref_f32_big, atol=1e-4, rtol=1e-4)
    # bf16 MXU path: gi is additionally rounded to bf16 in the VMEM scratch.
    assert jnp.allclose(out_bf16_lens, ref_bf16_lens, atol=1e-2, rtol=1e-2)
    assert jnp.allclose(out_bf16_lens, ref_f32_lens, atol=1e-1, rtol=1e-1)

    print("KERNEL_OK")
</pallas_src>

<mosaic_0001>
module attributes {stable_mosaic.version = 11 : i64} {
  func.func @_name_rnn_kernel(%arg0: i32, %arg1: memref<1xi32, #tpu.memory_space<smem>>, %arg2: memref<1x64x128xf32, #tpu.memory_space<vmem>>, %arg3: memref<128x384xf32, #tpu.memory_space<vmem>>, %arg4: memref<128x384xf32, #tpu.memory_space<vmem>>, %arg5: memref<1x384xf32, #tpu.memory_space<vmem>>, %arg6: memref<1x128xf32, #tpu.memory_space<vmem>>, %arg7: memref<128x128xf32, #tpu.memory_space<vmem>>, %arg8: memref<1x128xf32, #tpu.memory_space<vmem>>, %arg9: memref<8x1xi32, #tpu.memory_space<vmem>>, %arg10: memref<8x128xf32, #tpu.memory_space<vmem>>, %arg11: memref<64x384xf32, #tpu.memory_space<vmem>>, %arg12: memref<8x128xf32, #tpu.memory_space<vmem>>, %arg13: memref<8x128xf32, #tpu.memory_space<vmem>>) attributes {dimension_semantics = [#tpu.dimension_semantics<parallel>], iteration_bounds = array<i64: 1>, scalar_prefetch = 1 : i64, scratch_operands = 3 : i64, tpu.core_type = #tpu.core_type<tc>, window_params = [{transform_indices = @transform_0, window_bounds = array<i64: 1, 64, 128>}, {pipeline_mode = #tpu.pipeline_mode<synchronous>, transform_indices = @transform_1, window_bounds = array<i64: 128, 384>}, {pipeline_mode = #tpu.pipeline_mode<synchronous>, transform_indices = @transform_2, window_bounds = array<i64: 128, 384>}, {pipeline_mode = #tpu.pipeline_mode<synchronous>, transform_indices = @transform_3, window_bounds = array<i64: 1, 384>}, {pipeline_mode = #tpu.pipeline_mode<synchronous>, transform_indices = @transform_4, window_bounds = array<i64: 1, 128>}, {pipeline_mode = #tpu.pipeline_mode<synchronous>, transform_indices = @transform_5, window_bounds = array<i64: 128, 128>}, {pipeline_mode = #tpu.pipeline_mode<synchronous>, transform_indices = @transform_6, window_bounds = array<i64: 1, 128>}, {transform_indices = @transform_7, window_bounds = array<i64: 8, 1>}, {transform_indices = @transform_8, window_bounds = array<i64: 8, 128>}]} {
    %c0 = arith.constant 0 : index
    %c0_0 = arith.constant 0 : index
    %c0_1 = arith.constant 0 : index
    %0 = vector.load %arg2[%c0, %c0_0, %c0_1] : memref<1x64x128xf32, #tpu.memory_space<vmem>>, vector<1x64x128xf32>
    %1 = vector.shape_cast %0 : vector<1x64x128xf32> to vector<64x128xf32>
    %c0_2 = arith.constant 0 : index
    %c0_3 = arith.constant 0 : index
    %2 = vector.load %arg3[%c0_2, %c0_3] : memref<128x384xf32, #tpu.memory_space<vmem>>, vector<128x384xf32>
    %cst = arith.constant dense<0.000000e+00> : vector<64x384xf32>
    %3 = tpu.matmul %1, %2, %cst {dimension_numbers = #tpu.dot_dimension_numbers<[1], [0], [0], [1], [0, 0, 1, 1], [], []>} : vector<64x128xf32>, vector<128x384xf32>, vector<64x384xf32> -> vector<64x384xf32>
    %c0_4 = arith.constant 0 : index
    %c0_5 = arith.constant 0 : index
    %4 = vector.load %arg5[%c0_4, %c0_5] : memref<1x384xf32, #tpu.memory_space<vmem>>, vector<1x384xf32>
    %5 = vector.broadcast %4 : vector<1x384xf32> to vector<64x384xf32>
    %6 = arith.addf %3, %5 : vector<64x384xf32>
    %c0_6 = arith.constant 0 : index
    %c0_7 = arith.constant 0 : index
    %7 = vector.load %arg11[%c0_6, %c0_7] : memref<64x384xf32, #tpu.memory_space<vmem>>, vector<64x384xf32>
    tpu.vector_store %arg11[%c0_6, %c0_7], %6 {strides = array<i32>} : memref<64x384xf32, #tpu.memory_space<vmem>>, vector<64x384xf32>,
    %c0_8 = arith.constant 0 : index
    %c0_9 = arith.constant 0 : index
    %8 = vector.load %arg6[%c0_8, %c0_9] : memref<1x128xf32, #tpu.memory_space<vmem>>, vector<1x128xf32>
    %9 = vector.shape_cast %8 : vector<1x128xf32> to vector<1x128xf32>
    %10 = vector.broadcast %9 : vector<1x128xf32> to vector<8x128xf32>
    %c0_10 = arith.constant 0 : index
    %c0_11 = arith.constant 0 : index
    %11 = vector.load %arg9[%c0_10, %c0_11] : memref<8x1xi32, #tpu.memory_space<vmem>>, vector<8x1xi32>
    %12 = vector.shape_cast %11 : vector<8x1xi32> to vector<8x1xi32>
    %13 = vector.broadcast %12 : vector<8x1xi32> to vector<8x128xi32>
    %cst_12 = arith.constant 0.000000e+00 : f32
    %14 = vector.broadcast %cst_12 : f32 to vector<8x128xf32>
    %c0_13 = arith.constant 0 : index
    %c0_14 = arith.constant 0 : index
    %15 = vector.load %arg12[%c0_13, %c0_14] : memref<8x128xf32, #tpu.memory_space<vmem>>, vector<8x128xf32>
    tpu.vector_store %arg12[%c0_13, %c0_14], %14 {strides = array<i32>} : memref<8x128xf32, #tpu.memory_space<vmem>>, vector<8x128xf32>,
    %cst_15 = arith.constant 0.000000e+00 : f32
    %16 = vector.broadcast %cst_15 : f32 to vector<8x128xf32>
    %c0_16 = arith.constant 0 : index
    %c0_17 = arith.constant 0 : index
    %17 = vector.load %arg13[%c0_16, %c0_17] : memref<8x128xf32, #tpu.memory_space<vmem>>, vector<8x128xf32>
    tpu.vector_store %arg13[%c0_16, %c0_17], %16 {strides = array<i32>} : memref<8x128xf32, #tpu.memory_space<vmem>>, vector<8x128xf32>,
    %18 = arith.index_cast %arg0 : i32 to index
    %19 = memref.load %arg1[%18] : memref<1xi32, #tpu.memory_space<smem>>
    %c0_i32 = arith.constant 0 : i32
    %20 = arith.subi %19, %c0_i32 : i32
    %c1_i32 = arith.constant 1 : i32
    %c1_i32_18 = arith.constant 1 : i32
    %21 = arith.subi %c1_i32, %c1_i32_18 : i32
    %22 = arith.addi %20, %21 : i32
    %c1_i32_19 = arith.constant 1 : i32
    %23 = arith.divsi %22, %c1_i32_19 : i32
    %c1_i32_20 = arith.constant 1 : i32
    %c0_i32_21 = arith.constant 0 : i32
    %c0_i32_22 = arith.constant 0 : i32
    %24 = arith.subi %23, %c0_i32_22 : i32
    %25 = arith.addi %c0_i32_22, %24 : i32
    %c1_i32_23 = arith.constant 1 : i32
    scf.for %arg14 = %c0_i32_22 to %25 step %c1_i32_23  : i32 {
      %33 = arith.muli %arg14, %c1_i32_20 : i32
      %34 = arith.addi %c0_i32_21, %33 : i32
      %c8_i32 = arith.constant 8 : i32
      %35 = arith.muli %34, %c8_i32 : i32
      %36 = tpu.assume_multiple %35, 8 : i32
      %37 = arith.index_cast %36 : i32 to index
      %c0_33 = arith.constant 0 : index
      %38 = vector.load %arg11[%37, %c0_33] : memref<64x384xf32, #tpu.memory_space<vmem>>, vector<8x384xf32>
      %c0_34 = arith.constant 0 : index
      %c0_35 = arith.constant 0 : index
      %39 = vector.load %arg12[%c0_34, %c0_35] : memref<8x128xf32, #tpu.memory_space<vmem>>, vector<8x128xf32>
      %c0_36 = arith.constant 0 : index
      %c0_37 = arith.constant 0 : index
      %40 = vector.load %arg4[%c0_36, %c0_37] : memref<128x384xf32, #tpu.memory_space<vmem>>, vector<128x384xf32>
      %cst_38 = arith.constant dense<0.000000e+00> : vector<8x384xf32>
      %41 = tpu.matmul %39, %40, %cst_38 {dimension_numbers = #tpu.dot_dimension_numbers<[1], [0], [0], [1], [0, 0, 1, 1], [], []>} : vector<8x128xf32>, vector<128x384xf32>, vector<8x384xf32> -> vector<8x384xf32>
      %42 = vector.extract_strided_slice %38 {offsets = [0, 0], sizes = [8, 128], strides = [1, 1]} : vector<8x384xf32> to vector<8x128xf32>
      %43 = vector.extract_strided_slice %41 {offsets = [0, 0], sizes = [8, 128], strides = [1, 1]} : vector<8x384xf32> to vector<8x128xf32>
      %44 = arith.addf %42, %43 : vector<8x128xf32>
      %45 = arith.negf %44 : vector<8x128xf32>
      %46 = math.exp %45 : vector<8x128xf32>
      %cst_39 = arith.constant 1.000000e+00 : f32
      %47 = vector.broadcast %cst_39 : f32 to vector<8x128xf32>
      %48 = arith.addf %47, %46 : vector<8x128xf32>
      %49 = arith.divf %47, %48 : vector<8x128xf32>
      %50 = vector.extract_strided_slice %38 {offsets = [0, 128], sizes = [8, 128], strides = [1, 1]} : vector<8x384xf32> to vector<8x128xf32>
      %51 = vector.extract_strided_slice %41 {offsets = [0, 128], sizes = [8, 128], strides = [1, 1]} : vector<8x384xf32> to vector<8x128xf32>
      %52 = arith.addf %50, %51 : vector<8x128xf32>
      %53 = arith.negf %52 : vector<8x128xf32>
      %54 = math.exp %53 : vector<8x128xf32>
      %cst_40 = arith.constant 1.000000e+00 : f32
      %55 = vector.broadcast %cst_40 : f32 to vector<8x128xf32>
      %56 = arith.addf %55, %54 : vector<8x128xf32>
      %57 = arith.divf %55, %56 : vector<8x128xf32>
      %58 = vector.extract_strided_slice %38 {offsets = [0, 256], sizes = [8, 128], strides = [1, 1]} : vector<8x384xf32> to vector<8x128xf32>
      %59 = vector.extract_strided_slice %41 {offsets = [0, 256], sizes = [8, 128], strides = [1, 1]} : vector<8x384xf32> to vector<8x128xf32>
      %60 = arith.addf %59, %10 : vector<8x128xf32>
      %61 = arith.mulf %49, %60 : vector<8x128xf32>
      %62 = arith.addf %58, %61 : vector<8x128xf32>
      %63 = math.tanh %62 : vector<8x128xf32>
      %cst_41 = arith.constant 1.000000e+00 : f32
      %64 = vector.broadcast %cst_41 : f32 to vector<8x128xf32>
      %65 = arith.subf %64, %57 : vector<8x128xf32>
      %66 = arith.mulf %65, %63 : vector<8x128xf32>
      %67 = arith.mulf %57, %39 : vector<8x128xf32>
      %68 = arith.addf %66, %67 : vector<8x128xf32>
      %c0_42 = arith.constant 0 : index
      %c0_43 = arith.constant 0 : index
      %69 = vector.load %arg12[%c0_42, %c0_43] : memref<8x128xf32, #tpu.memory_space<vmem>>, vector<8x128xf32>
      tpu.vector_store %arg12[%c0_42, %c0_43], %68 {strides = array<i32>} : memref<8x128xf32, #tpu.memory_space<vmem>>, vector<8x128xf32>,
      %c1_i32_44 = arith.constant 1 : i32
      %70 = arith.addi %34, %c1_i32_44 : i32
      %71 = vector.broadcast %70 : i32 to vector<8x128xi32>
      %72 = arith.cmpi eq, %13, %71 : vector<8x128xi32>
      %c0_45 = arith.constant 0 : index
      %c0_46 = arith.constant 0 : index
      %73 = vector.load %arg13[%c0_45, %c0_46] : memref<8x128xf32, #tpu.memory_space<vmem>>, vector<8x128xf32>
      %74 = arith.select %72, %68, %73 : vector<8x128xi1>, vector<8x128xf32>
      %c0_47 = arith.constant 0 : index
      %c0_48 = arith.constant 0 : index
      %75 = vector.load %arg13[%c0_47, %c0_48] : memref<8x128xf32, #tpu.memory_space<vmem>>, vector<8x128xf32>
      tpu.vector_store %arg13[%c0_47, %c0_48], %74 {strides = array<i32>} : memref<8x128xf32, #tpu.memory_space<vmem>>, vector<8x128xf32>,
    }
    %c0_24 = arith.constant 0 : index
    %c0_25 = arith.constant 0 : index
    %26 = vector.load %arg13[%c0_24, %c0_25] : memref<8x128xf32, #tpu.memory_space<vmem>>, vector<8x128xf32>
    %c0_26 = arith.constant 0 : index
    %c0_27 = arith.constant 0 : index
    %27 = vector.load %arg7[%c0_26, %c0_27] : memref<128x128xf32, #tpu.memory_space<vmem>>, vector<128x128xf32>
    %cst_28 = arith.constant dense<0.000000e+00> : vector<8x128xf32>
    %28 = tpu.matmul %26, %27, %cst_28 {dimension_numbers = #tpu.dot_dimension_numbers<[1], [0], [0], [1], [0, 0, 1, 1], [], []>} : vector<8x128xf32>, vector<128x128xf32>, vector<8x128xf32> -> vector<8x128xf32>
    %c0_29 = arith.constant 0 : index
    %c0_30 = arith.constant 0 : index
    %29 = vector.load %arg8[%c0_29, %c0_30] : memref<1x128xf32, #tpu.memory_space<vmem>>, vector<1x128xf32>
    %30 = vector.broadcast %29 : vector<1x128xf32> to vector<8x128xf32>
    %31 = arith.addf %28, %30 : vector<8x128xf32>
    %c0_31 = arith.constant 0 : index
    %c0_32 = arith.constant 0 : index
    %32 = vector.load %arg10[%c0_31, %c0_32] : memref<8x128xf32, #tpu.memory_space<vmem>>, vector<8x128xf32>
    tpu.vector_store %arg10[%c0_31, %c0_32], %31 {strides = array<i32>} : memref<8x128xf32, #tpu.memory_space<vmem>>, vector<8x128xf32>,
    return
  }
  func.func @transform_0(%arg0: i32, %arg1: memref<1xi32, #tpu.memory_space<smem>>) -> (i32, i32, i32) {
    %c0_i32 = arith.constant 0 : i32
    %c0_i32_0 = arith.constant 0 : i32
    %c0_i32_1 = arith.constant 0 : i32
    return %arg0, %c0_i32, %c0_i32_0 : i32, i32, i32
  }
  func.func @transform_1(%arg0: i32, %arg1: memref<1xi32, #tpu.memory_space<smem>>) -> (i32, i32) {
    %c0_i32 = arith.constant 0 : i32
    %c0_i32_0 = arith.constant 0 : i32
    %c0_i32_1 = arith.constant 0 : i32
    return %c0_i32, %c0_i32_0 : i32, i32
  }
  func.func @transform_2(%arg0: i32, %arg1: memref<1xi32, #tpu.memory_space<smem>>) -> (i32, i32) {
    %c0_i32 = arith.constant 0 : i32
    %c0_i32_0 = arith.constant 0 : i32
    %c0_i32_1 = arith.constant 0 : i32
    return %c0_i32, %c0_i32_0 : i32, i32
  }
  func.func @transform_3(%arg0: i32, %arg1: memref<1xi32, #tpu.memory_space<smem>>) -> (i32, i32) {
    %c0_i32 = arith.constant 0 : i32
    %c0_i32_0 = arith.constant 0 : i32
    %c0_i32_1 = arith.constant 0 : i32
    return %c0_i32, %c0_i32_0 : i32, i32
  }
  func.func @transform_4(%arg0: i32, %arg1: memref<1xi32, #tpu.memory_space<smem>>) -> (i32, i32) {
    %c0_i32 = arith.constant 0 : i32
    %c0_i32_0 = arith.constant 0 : i32
    %c0_i32_1 = arith.constant 0 : i32
    return %c0_i32, %c0_i32_0 : i32, i32
  }
  func.func @transform_5(%arg0: i32, %arg1: memref<1xi32, #tpu.memory_space<smem>>) -> (i32, i32) {
    %c0_i32 = arith.constant 0 : i32
    %c0_i32_0 = arith.constant 0 : i32
    %c0_i32_1 = arith.constant 0 : i32
    return %c0_i32, %c0_i32_0 : i32, i32
  }
  func.func @transform_6(%arg0: i32, %arg1: memref<1xi32, #tpu.memory_space<smem>>) -> (i32, i32) {
    %c0_i32 = arith.constant 0 : i32
    %c0_i32_0 = arith.constant 0 : i32
    %c0_i32_1 = arith.constant 0 : i32
    return %c0_i32, %c0_i32_0 : i32, i32
  }
  func.func @transform_7(%arg0: i32, %arg1: memref<1xi32, #tpu.memory_space<smem>>) -> (i32, i32) {
    %c0_i32 = arith.constant 0 : i32
    %c0_i32_0 = arith.constant 0 : i32
    return %arg0, %c0_i32 : i32, i32
  }
  func.func @transform_8(%arg0: i32, %arg1: memref<1xi32, #tpu.memory_space<smem>>) -> (i32, i32) {
    %c0_i32 = arith.constant 0 : i32
    %c0_i32_0 = arith.constant 0 : i32
    return %arg0, %c0_i32 : i32, i32
  }
}

</mosaic_0001>

<llo_original>
// kernel: name_rnn_forward.1
$region0: #{name_rnn_forward.1}
  #allocation0 [shape = 'u32[]', space=smem, size = 0x4, offset = 0x4, fixed_abs, tag = 'smem constant byte address 0x4 - core index']
  #allocation1 [shape = 'u32[72,128]{1,0:T(1,128)}', space=vmem, size = 0x9000, scoped, tag = 'internal scratch']
  #allocation2 [shape = 'f32[64,384]{1,0:T(8,128)}', space=vmem, size = 0x18000, scoped, tag = 'scratch operand']
  #allocation3 [shape = 'f32[8,128]{1,0:T(8,128)}', space=vmem, size = 0x1000, scoped, tag = 'scratch operand']
  #allocation4 [shape = 'f32[8,128]{1,0:T(8,128)}', space=vmem, size = 0x1000, scoped, tag = 'scratch operand']
  #allocation5 [shape = 's32[1]{0}', space=sflag, size = 0x4, scoped, tag = 'scoped memory for name_rnn_forward.1']
  #allocation6 [shape = 's32[1]{0:T(128)S(6)}', space=smem, size = 0x200, scoped, tag = 'prefetched SMEM operand 0']
  %s0 = inlined_call_operand.<no memory space> [shape: s32[1], index: 0, kind: input, shape index: {}]
  %s1 = inlined_call_operand.vmem [shape: f32[1,64,128], index: 1, kind: input, shape index: {}]
  %s2 = inlined_call_operand.vmem [shape: f32[128,384], index: 2, kind: input, shape index: {}]
  %s3 = inlined_call_operand.vmem [shape: f32[128,384], index: 3, kind: input, shape index: {}]
  %s4 = inlined_call_operand.vmem [shape: f32[1,384], index: 4, kind: input, shape index: {}]
  %s5 = inlined_call_operand.vmem [shape: f32[1,128], index: 5, kind: input, shape index: {}]
  %s6 = inlined_call_operand.vmem [shape: f32[128,128], index: 6, kind: input, shape index: {}]
  %s7 = inlined_call_operand.vmem [shape: f32[1,128], index: 7, kind: input, shape index: {}]
  %s8 = inlined_call_operand.vmem [shape: s32[8,1], index: 8, kind: input, shape index: {}]
  %s9 = inlined_call_operand.vmem [shape: f32[8,128], index: 9, kind: output, shape index: {}]
  %s10 = sld [smem:[#allocation0]]
  $region49: #{name_rnn_forward.1} parent=0
    _
  %s12 = ssub.s32 1, %s10
  %s13 = scalar_select 0, %s12, %s10
  %14 = sst [smem:[#allocation6]] %s0
  // Predicated region
  $region2: #{name_rnn_forward.1} parent=0 // pred_check
    _
  $region3: #{name_rnn_forward.1} parent=0 // pred_check_branch
    %16 = sbr.rel (0) target = $region5
  $region4: #{name_rnn_forward.1} parent=0 // pred_region
    _
  $region5: #{name_rnn_forward.1} parent=0 // pred_fallthru
    _
  // Predicated region
  $region6: #{name_rnn_forward.1} parent=0 // pred_check
    _
  $region7: #{name_rnn_forward.1} parent=0 // pred_check_branch
    %18 = sbr.rel (0) target = $region9
  $region8: #{name_rnn_forward.1} parent=0 // pred_region
    _
  $region9: #{name_rnn_forward.1} parent=0 // pred_fallthru
    _
  // Predicated region
  $region10: #{name_rnn_forward.1} parent=0 // pred_check
    _
  $region11: #{name_rnn_forward.1} parent=0 // pred_check_branch
    %20 = sbr.rel (0) target = $region13
  $region12: #{name_rnn_forward.1} parent=0 // pred_region
    _
  $region13: #{name_rnn_forward.1} parent=0 // pred_fallthru
    _
  // Predicated region
  $region14: #{name_rnn_forward.1} parent=0 // pred_check
    _
  $region15: #{name_rnn_forward.1} parent=0 // pred_check_branch
    %22 = sbr.rel (0) target = $region17
  $region16: #{name_rnn_forward.1} parent=0 // pred_region
    _
  $region17: #{name_rnn_forward.1} parent=0 // pred_fallthru
    _
  // Predicated region
  $region18: #{name_rnn_forward.1} parent=0 // pred_check
    _
  $region19: #{name_rnn_forward.1} parent=0 // pred_check_branch
    %24 = sbr.rel (0) target = $region21
  $region20: #{name_rnn_forward.1} parent=0 // pred_region
    _
  $region21: #{name_rnn_forward.1} parent=0 // pred_fallthru
    _
  // Predicated region
  $region22: #{name_rnn_forward.1} parent=0 // pred_check
    _
  $region23: #{name_rnn_forward.1} parent=0 // pred_check_branch
    %26 = sbr.rel (0) target = $region25
  $region24: #{name_rnn_forward.1} parent=0 // pred_region
    _
  $region25: #{name_rnn_forward.1} parent=0 // pred_fallthru
    _
  // Predicated region
  $region26: #{name_rnn_forward.1} parent=0 // pred_check
    _
  $region27: #{name_rnn_forward.1} parent=0 // pred_check_branch
    %28 = sbr.rel (0) target = $region29
  $region28: #{name_rnn_forward.1} parent=0 // pred_region
    _
  $region29: #{name_rnn_forward.1} parent=0 // pred_fallthru
    _
  // Predicated region
  $region30: #{name_rnn_forward.1} parent=0 // pred_check
    _
  $region31: #{name_rnn_forward.1} parent=0 // pred_check_branch
    %30 = sbr.rel (0) target = $region33
  $region32: #{name_rnn_forward.1} parent=0 // pred_region
    _
  $region33: #{name_rnn_forward.1} parent=0 // pred_fallthru
    _
  %v31 = vld [vmem:[%s1] sm:$0xff]
  %v32 = vld [vmem:[%s1 + $0x8] sm:$0xff]
  %v33 = vld [vmem:[%s1 + $0x10] sm:$0xff]
  %v34 = vld [vmem:[%s1 + $0x18] sm:$0xff]
  %v35 = vld [vmem:[%s1 + $0x20] sm:$0xff]
  %v36 = vld [vmem:[%s1 + $0x28] sm:$0xff]
  %v37 = vld [vmem:[%s1 + $0x30] sm:$0xff]
  %v38 = vld [vmem:[%s1 + $0x38] sm:$0xff]
  %v39 = vld [vmem:[%s2] sm:$0xff]
  %v40 = vld [vmem:[%s2 + $0x8] sm:$0xff]
  %v41 = vld [vmem:[%s2 + $0x10] sm:$0xff]
  %v42 = vld [vmem:[%s2 + $0x18] sm:$0xff]
  %v43 = vld [vmem:[%s2 + $0x20] sm:$0xff]
  %v44 = vld [vmem:[%s2 + $0x28] sm:$0xff]
  %v45 = vld [vmem:[%s2 + $0x30] sm:$0xff]
  %v46 = vld [vmem:[%s2 + $0x38] sm:$0xff]
  %v47 = vld [vmem:[%s2 + $0x40] sm:$0xff]
  %v48 = vld [vmem:[%s2 + $0x48] sm:$0xff]
  %v49 = vld [vmem:[%s2 + $0x50] sm:$0xff]
  %v50 = vld [vmem:[%s2 + $0x58] sm:$0xff]
  %v51 = vld [vmem:[%s2 + $0x60] sm:$0xff]
  %v52 = vld [vmem:[%s2 + $0x68] sm:$0xff]
  %v53 = vld [vmem:[%s2 + $0x70] sm:$0xff]
  %v54 = vld [vmem:[%s2 + $0x78] sm:$0xff]
  %v55 = vld [vmem:[%s2 + $0x80] sm:$0xff]
  %v56 = vld [vmem:[%s2 + $0x88] sm:$0xff]
  %v57 = vld [vmem:[%s2 + $0x90] sm:$0xff]
  %v58 = vld [vmem:[%s2 + $0x98] sm:$0xff]
  %v59 = vld [vmem:[%s2 + $0xa0] sm:$0xff]
  %v60 = vld [vmem:[%s2 + $0xa8] sm:$0xff]
  %v61 = vld [vmem:[%s2 + $0xb0] sm:$0xff]
  %v62 = vld [vmem:[%s2 + $0xb8] sm:$0xff]
  %v63 = vld [vmem:[%s2 + $0xc0] sm:$0xff]
  %v64 = vld [vmem:[%s2 + $0xc8] sm:$0xff]
  %v65 = vld [vmem:[%s2 + $0xd0] sm:$0xff]
  %v66 = vld [vmem:[%s2 + $0xd8] sm:$0xff]
  %v67 = vld [vmem:[%s2 + $0xe0] sm:$0xff]
  %v68 = vld [vmem:[%s2 + $0xe8] sm:$0xff]
  %v69 = vld [vmem:[%s2 + $0xf0] sm:$0xff]
  %v70 = vld [vmem:[%s2 + $0xf8] sm:$0xff]
  %v71 = vld [vmem:[%s2 + $0x100] sm:$0xff]
  %v72 = vld [vmem:[%s2 + $0x108] sm:$0xff]
  %v73 = vld [vmem:[%s2 + $0x110] sm:$0xff]
  %v74 = vld [vmem:[%s2 + $0x118] sm:$0xff]
  %v75 = vld [vmem:[%s2 + $0x120] sm:$0xff]
  %v76 = vld [vmem:[%s2 + $0x128] sm:$0xff]
  %v77 = vld [vmem:[%s2 + $0x130] sm:$0xff]
  %v78 = vld [vmem:[%s2 + $0x138] sm:$0xff]
  %v79 = vld [vmem:[%s2 + $0x140] sm:$0xff]
  %v80 = vld [vmem:[%s2 + $0x148] sm:$0xff]
  %v81 = vld [vmem:[%s2 + $0x150] sm:$0xff]
  %v82 = vld [vmem:[%s2 + $0x158] sm:$0xff]
  %v83 = vld [vmem:[%s2 + $0x160] sm:$0xff]
  %v84 = vld [vmem:[%s2 + $0x168] sm:$0xff]
  %v85 = vld [vmem:[%s2 + $0x170] sm:$0xff]
  %v86 = vld [vmem:[%s2 + $0x178] sm:$0xff]
  %v87 = vld [vmem:[%s4] sm:$0x7]
  %v89 = vperm.slane %v87, 0
  %v90 = vperm.slane %v87, 1
  %v91 = vperm.slane %v87, 2
  %95 = vmatpush.msra.mxu0 %v84
  %96 = vmatpush.msra.mxu0 %v81
  %97 = vmatpush.msra.mxu0 %v78
  %98 = vmatpush.msra.mxu0 %v75
  %99 = vmatpush.msra.mxu0 %v72
  %100 = vmatpush.msra.mxu0 %v69
  %101 = vmatpush.msra.mxu0 %v66
  %102 = vmatpush.msra.mxu0 %v63
  %103 = vmatpush.msra.mxu0 %v60
  %104 = vmatpush.msra.mxu0 %v57
  %105 = vmatpush.msra.mxu0 %v54
  %106 = vmatpush.msra.mxu0 %v51
  %107 = vmatpush.msra.mxu0 %v48
  %108 = vmatpush.msra.mxu0 %v45
  %109 = vmatpush.msra.mxu0 %v42
  %110 = vmatpush.msra.mxu0 %v39
  %111 = vmatmul.f32.gmra.mxu0 %v31
  %v112 = vpop.f32.mrf.mxu0
  %v113 = vadd.f32 %v89, %v112
  %114 = vmatmul.f32.gmra.mxu0 %v32
  %v115 = vpop.f32.mrf.mxu0
  %v116 = vadd.f32 %v89, %v115
  %117 = vmatmul.f32.gmra.mxu0 %v33
  %v118 = vpop.f32.mrf.mxu0
  %v119 = vadd.f32 %v89, %v118
  %120 = vmatmul.f32.gmra.mxu0 %v34
  %v121 = vpop.f32.mrf.mxu0
  %v122 = vadd.f32 %v89, %v121
  %123 = vmatmul.f32.gmra.mxu0 %v35
  %v124 = vpop.f32.mrf.mxu0
  %v125 = vadd.f32 %v89, %v124
  %126 = vmatmul.f32.gmra.mxu0 %v36
  %v127 = vpop.f32.mrf.mxu0
  %v128 = vadd.f32 %v89, %v127
  %129 = vmatmul.f32.gmra.mxu0 %v37
  %v130 = vpop.f32.mrf.mxu0
  %v131 = vadd.f32 %v89, %v130
  %132 = vmatmul.f32.gmra.mxu0 %v38
  %v133 = vpop.f32.mrf.mxu0
  %v134 = vadd.f32 %v89, %v133
  %135 = vdwg.mxu0
  %136 = vmatpush.msra.mxu0 %v85
  %137 = vmatpush.msra.mxu0 %v82
  %138 = vmatpush.msra.mxu0 %v79
  %139 = vmatpush.msra.mxu0 %v76
  %140 = vmatpush.msra.mxu0 %v73
  %141 = vmatpush.msra.mxu0 %v70
  %142 = vmatpush.msra.mxu0 %v67
  %143 = vmatpush.msra.mxu0 %v64
  %144 = vmatpush.msra.mxu0 %v61
  %145 = vmatpush.msra.mxu0 %v58
  %146 = vmatpush.msra.mxu0 %v55
  %147 = vmatpush.msra.mxu0 %v52
  %148 = vmatpush.msra.mxu0 %v49
  %149 = vmatpush.msra.mxu0 %v46
  %150 = vmatpush.msra.mxu0 %v43
  %151 = vmatpush.msra.mxu0 %v40
  %152 = vmatmul.f32.gmra.mxu0 %v31
  %v153 = vpop.f32.mrf.mxu0
  %v154 = vadd.f32 %v90, %v153
  %155 = vmatmul.f32.gmra.mxu0 %v32
  %v156 = vpop.f32.mrf.mxu0
  %v157 = vadd.f32 %v90, %v156
  %158 = vmatmul.f32.gmra.mxu0 %v33
  %v159 = vpop.f32.mrf.mxu0
  %v160 = vadd.f32 %v90, %v159
  %161 = vmatmul.f32.gmra.mxu0 %v34
  %v162 = vpop.f32.mrf.mxu0
  %v163 = vadd.f32 %v90, %v162
  %164 = vmatmul.f32.gmra.mxu0 %v35
  %v165 = vpop.f32.mrf.mxu0
  %v166 = vadd.f32 %v90, %v165
  %167 = vmatmul.f32.gmra.mxu0 %v36
  %v168 = vpop.f32.mrf.mxu0
  %v169 = vadd.f32 %v90, %v168
  %170 = vmatmul.f32.gmra.mxu0 %v37
  %v171 = vpop.f32.mrf.mxu0
  %v172 = vadd.f32 %v90, %v171
  %173 = vmatmul.f32.gmra.mxu0 %v38
  %v174 = vpop.f32.mrf.mxu0
  %v175 = vadd.f32 %v90, %v174
  %176 = vdwg.mxu0
  %177 = vmatpush.msra.mxu0 %v86
  %178 = vmatpush.msra.mxu0 %v83
  %179 = vmatpush.msra.mxu0 %v80
  %180 = vmatpush.msra.mxu0 %v77
  %181 = vmatpush.msra.mxu0 %v74
  %182 = vmatpush.msra.mxu0 %v71
  %183 = vmatpush.msra.mxu0 %v68
  %184 = vmatpush.msra.mxu0 %v65
  %185 = vmatpush.msra.mxu0 %v62
  %186 = vmatpush.msra.mxu0 %v59
  %187 = vmatpush.msra.mxu0 %v56
  %188 = vmatpush.msra.mxu0 %v53
  %189 = vmatpush.msra.mxu0 %v50
  %190 = vmatpush.msra.mxu0 %v47
  %191 = vmatpush.msra.mxu0 %v44
  %192 = vmatpush.msra.mxu0 %v41
  %193 = vmatmul.f32.gmra.mxu0 %v31
  %v194 = vpop.f32.mrf.mxu0
  %v195 = vadd.f32 %v91, %v194
  %196 = vmatmul.f32.gmra.mxu0 %v32
  %v197 = vpop.f32.mrf.mxu0
  %v198 = vadd.f32 %v91, %v197
  %199 = vmatmul.f32.gmra.mxu0 %v33
  %v200 = vpop.f32.mrf.mxu0
  %v201 = vadd.f32 %v91, %v200
  %202 = vmatmul.f32.gmra.mxu0 %v34
  %v203 = vpop.f32.mrf.mxu0
  %v204 = vadd.f32 %v91, %v203
  %205 = vmatmul.f32.gmra.mxu0 %v35
  %v206 = vpop.f32.mrf.mxu0
  %v207 = vadd.f32 %v91, %v206
  %208 = vmatmul.f32.gmra.mxu0 %v36
  %v209 = vpop.f32.mrf.mxu0
  %v210 = vadd.f32 %v91, %v209
  %211 = vmatmul.f32.gmra.mxu0 %v37
  %v212 = vpop.f32.mrf.mxu0
  %v213 = vadd.f32 %v91, %v212
  %214 = vmatmul.f32.gmra.mxu0 %v38
  %v215 = vpop.f32.mrf.mxu0
  %v216 = vadd.f32 %v91, %v215
  %217 = vdwg.mxu0
  %218 = vst [vmem:[#allocation2] sm:$0xff] %v113
  %219 = vst [vmem:[#allocation2 + $0x8] sm:$0xff] %v154
  %220 = vst [vmem:[#allocation2 + $0x10] sm:$0xff] %v195
  %221 = vst [vmem:[#allocation2 + $0x18] sm:$0xff] %v116
  %222 = vst [vmem:[#allocation2 + $0x20] sm:$0xff] %v157
  %223 = vst [vmem:[#allocation2 + $0x28] sm:$0xff] %v198
  %224 = vst [vmem:[#allocation2 + $0x30] sm:$0xff] %v119
  %225 = vst [vmem:[#allocation2 + $0x38] sm:$0xff] %v160
  %226 = vst [vmem:[#allocation2 + $0x40] sm:$0xff] %v201
  %227 = vst [vmem:[#allocation2 + $0x48] sm:$0xff] %v122
  %228 = vst [vmem:[#allocation2 + $0x50] sm:$0xff] %v163
  %229 = vst [vmem:[#allocation2 + $0x58] sm:$0xff] %v204
  %230 = vst [vmem:[#allocation2 + $0x60] sm:$0xff] %v125
  %231 = vst [vmem:[#allocation2 + $0x68] sm:$0xff] %v166
  %232 = vst [vmem:[#allocation2 + $0x70] sm:$0xff] %v207
  %233 = vst [vmem:[#allocation2 + $0x78] sm:$0xff] %v128
  %234 = vst [vmem:[#allocation2 + $0x80] sm:$0xff] %v169
  %235 = vst [vmem:[#allocation2 + $0x88] sm:$0xff] %v210
  %236 = vst [vmem:[#allocation2 + $0x90] sm:$0xff] %v131
  %237 = vst [vmem:[#allocation2 + $0x98] sm:$0xff] %v172
  %238 = vst [vmem:[#allocation2 + $0xa0] sm:$0xff] %v213
  %239 = vst [vmem:[#allocation2 + $0xa8] sm:$0xff] %v134
  %240 = vst [vmem:[#allocation2 + $0xb0] sm:$0xff] %v175
  %241 = vst [vmem:[#allocation2 + $0xb8] sm:$0xff] %v216
  %v242 = vld [vmem:[%s5] sm:$0x1]
  %v244 = vperm.slane %v242, 0
  %v246 = vld [vmem:[%s8] sm:$0xff]
  %247 = vset.pattern.permute.xlu0 0
  %248 = vperm.xlu0 %247, %v246
  %v249 = vpop.permute.xlu0 %248
  %250 = vst [vmem:[#allocation3] sm:$0xff] 0.0
  %251 = vst [vmem:[#allocation4] sm:$0xff] 0.0
  %s252 = sld [smem:[#allocation6]]
  // While loop
  $region34: #{name_rnn_forward.1} parent=0 // loop_pre_header
    _
  $region35: #{name_rnn_forward.1} parent=0 // loop_header
    %s254 = sphi 0, %s256
    %p255 = scmp.ge.s32.totalorder %s254, %s252
  $region36: #{name_rnn_forward.1} parent=0 // loop_header_branch
    %258 = sbr.rel (%p255) target = $region40
  $region37: #{name_rnn_forward.1} parent=0 // loop_body
    %s259 = smul.u32 %s254, 8
    %s260 = sshra.s32 %s259, 3
    %s261 = sand.u32 %s259, 7
    %s262 = smul.u32 %s260, 3
    %s263 = smul.addr %s262, 8
    %s264 = scalar_lea.vmem [#allocation2], %s263
    %v265 = vld [vmem:[%s264] sm:$0xff]
    %v266 = vld [vmem:[%s264 + $0x8] sm:$0xff]
    %v267 = vld [vmem:[%s264 + $0x10] sm:$0xff]
    %v268 = vld [vmem:[#allocation3] sm:$0xff]
    %v269 = vld [vmem:[%s3] sm:$0xff]
    %v270 = vld [vmem:[%s3 + $0x8] sm:$0xff]
    %v271 = vld [vmem:[%s3 + $0x10] sm:$0xff]
    %v272 = vld [vmem:[%s3 + $0x18] sm:$0xff]
    %v273 = vld [vmem:[%s3 + $0x20] sm:$0xff]
    %v274 = vld [vmem:[%s3 + $0x28] sm:$0xff]
    %v275 = vld [vmem:[%s3 + $0x30] sm:$0xff]
    %v276 = vld [vmem:[%s3 + $0x38] sm:$0xff]
    %v277 = vld [vmem:[%s3 + $0x40] sm:$0xff]
    %v278 = vld [vmem:[%s3 + $0x48] sm:$0xff]
    %v279 = vld [vmem:[%s3 + $0x50] sm:$0xff]
    %v280 = vld [vmem:[%s3 + $0x58] sm:$0xff]
    %v281 = vld [vmem:[%s3 + $0x60] sm:$0xff]
    %v282 = vld [vmem:[%s3 + $0x68] sm:$0xff]
    %v283 = vld [vmem:[%s3 + $0x70] sm:$0xff]
    %v284 = vld [vmem:[%s3 + $0x78] sm:$0xff]
    %v285 = vld [vmem:[%s3 + $0x80] sm:$0xff]
    %v286 = vld [vmem:[%s3 + $0x88] sm:$0xff]
    %v287 = vld [vmem:[%s3 + $0x90] sm:$0xff]
    %v288 = vld [vmem:[%s3 + $0x98] sm:$0xff]
    %v289 = vld [vmem:[%s3 + $0xa0] sm:$0xff]
    %v290 = vld [vmem:[%s3 + $0xa8] sm:$0xff]
    %v291 = vld [vmem:[%s3 + $0xb0] sm:$0xff]
    %v292 = vld [vmem:[%s3 + $0xb8] sm:$0xff]
    %v293 = vld [vmem:[%s3 + $0xc0] sm:$0xff]
    %v294 = vld [vmem:[%s3 + $0xc8] sm:$0xff]
    %v295 = vld [vmem:[%s3 + $0xd0] sm:$0xff]
    %v296 = vld [vmem:[%s3 + $0xd8] sm:$0xff]
    %v297 = vld [vmem:[%s3 + $0xe0] sm:$0xff]
    %v298 = vld [vmem:[%s3 + $0xe8] sm:$0xff]
    %v299 = vld [vmem:[%s3 + $0xf0] sm:$0xff]
    %v300 = vld [vmem:[%s3 + $0xf8] sm:$0xff]
    %v301 = vld [vmem:[%s3 + $0x100] sm:$0xff]
    %v302 = vld [vmem:[%s3 + $0x108] sm:$0xff]
    %v303 = vld [vmem:[%s3 + $0x110] sm:$0xff]
    %v304 = vld [vmem:[%s3 + $0x118] sm:$0xff]
    %v305 = vld [vmem:[%s3 + $0x120] sm:$0xff]
    %v306 = vld [vmem:[%s3 + $0x128] sm:$0xff]
    %v307 = vld [vmem:[%s3 + $0x130] sm:$0xff]
    %v308 = vld [vmem:[%s3 + $0x138] sm:$0xff]
    %v309 = vld [vmem:[%s3 + $0x140] sm:$0xff]
    %v310 = vld [vmem:[%s3 + $0x148] sm:$0xff]
    %v311 = vld [vmem:[%s3 + $0x150] sm:$0xff]
    %v312 = vld [vmem:[%s3 + $0x158] sm:$0xff]
    %v313 = vld [vmem:[%s3 + $0x160] sm:$0xff]
    %v314 = vld [vmem:[%s3 + $0x168] sm:$0xff]
    %v315 = vld [vmem:[%s3 + $0x170] sm:$0xff]
    %v316 = vld [vmem:[%s3 + $0x178] sm:$0xff]
    %317 = vmatpush.msra.mxu0 %v314
    %318 = vmatpush.msra.mxu0 %v311
    %319 = vmatpush.msra.mxu0 %v308
    %320 = vmatpush.msra.mxu0 %v305
    %321 = vmatpush.msra.mxu0 %v302
    %322 = vmatpush.msra.mxu0 %v299
    %323 = vmatpush.msra.mxu0 %v296
    %324 = vmatpush.msra.mxu0 %v293
    %325 = vmatpush.msra.mxu0 %v290
    %326 = vmatpush.msra.mxu0 %v287
    %327 = vmatpush.msra.mxu0 %v284
    %328 = vmatpush.msra.mxu0 %v281
    %329 = vmatpush.msra.mxu0 %v278
    %330 = vmatpush.msra.mxu0 %v275
    %331 = vmatpush.msra.mxu0 %v272
    %332 = vmatpush.msra.mxu0 %v269
    %333 = vmatmul.f32.gmra.mxu0 %v268
    %v334 = vpop.f32.mrf.mxu0
    %v335 = vadd.f32 0.0, %v334
    %336 = vdwg.mxu0
    %337 = vmatpush.msra.mxu0 %v315
    %338 = vmatpush.msra.mxu0 %v312
    %339 = vmatpush.msra.mxu0 %v309
    %340 = vmatpush.msra.mxu0 %v306
    %341 = vmatpush.msra.mxu0 %v303
    %342 = vmatpush.msra.mxu0 %v300
    %343 = vmatpush.msra.mxu0 %v297
    %344 = vmatpush.msra.mxu0 %v294
    %345 = vmatpush.msra.mxu0 %v291
    %346 = vmatpush.msra.mxu0 %v288
    %347 = vmatpush.msra.mxu0 %v285
    %348 = vmatpush.msra.mxu0 %v282
    %349 = vmatpush.msra.mxu0 %v279
    %350 = vmatpush.msra.mxu0 %v276
    %351 = vmatpush.msra.mxu0 %v273
    %352 = vmatpush.msra.mxu0 %v270
    %353 = vmatmul.f32.gmra.mxu0 %v268
    %v354 = vpop.f32.mrf.mxu0
    %v355 = vadd.f32 0.0, %v354
    %356 = vdwg.mxu0
    %357 = vmatpush.msra.mxu0 %v316
    %358 = vmatpush.msra.mxu0 %v313
    %359 = vmatpush.msra.mxu0 %v310
    %360 = vmatpush.msra.mxu0 %v307
    %361 = vmatpush.msra.mxu0 %v304
    %362 = vmatpush.msra.mxu0 %v301
    %363 = vmatpush.msra.mxu0 %v298
    %364 = vmatpush.msra.mxu0 %v295
    %365 = vmatpush.msra.mxu0 %v292
    %366 = vmatpush.msra.mxu0 %v289
    %367 = vmatpush.msra.mxu0 %v286
    %368 = vmatpush.msra.mxu0 %v283
    %369 = vmatpush.msra.mxu0 %v280
    %370 = vmatpush.msra.mxu0 %v277
    %371 = vmatpush.msra.mxu0 %v274
    %372 = vmatpush.msra.mxu0 %v271
    %373 = vmatmul.f32.gmra.mxu0 %v268
    %v374 = vpop.f32.mrf.mxu0
    %v375 = vadd.f32 0.0, %v374
    %376 = vdwg.mxu0
    %v377 = vadd.f32 %v265, %v335
    %v378 = vxor.u32 %v377, 2147483648
    %v379 = vmul.f32 %v378, 1.442695
    %v380 = vpow.pop %v379
    %v381 = vadd.f32 %v380, 1.0
    %v382 = vrcp.pop %v381
    %v383 = vmul.f32 %v381, %v382
    %v384 = vsub.f32 1.0, %v383
    %v385 = vmul.f32 %v382, %v384
    %v386 = vadd.f32 %v382, %v385
    %vm387 = vweird.f32 %v381
    %vm388 = vweird.f32 %v382
    %vm389 = vmor %vm387, %vm388
    %v390 = vsel %vm389, %v382, %v386
    %v391 = vand.u32 2147483647, %v381
    %vm392 = vcmp.eq.f32.partialorder %v391, 8.507059e+37
    %v393 = vand.u32 %v381, 2147483648
    %v394 = vor.u32 1.1754944e-38, %v393
    %v395 = vsel %vm392, %v394, %v390
    %v396 = vmul.f32 1.0, %v395
    %v397 = vadd.f32 %v266, %v355
    %v398 = vxor.u32 %v397, 2147483648
    %v399 = vmul.f32 %v398, 1.442695
    %v400 = vpow.pop %v399
    %v401 = vadd.f32 %v400, 1.0
    %v402 = vrcp.pop %v401
    %v403 = vmul.f32 %v401, %v402
    %v404 = vsub.f32 1.0, %v403
    %v405 = vmul.f32 %v402, %v404
    %v406 = vadd.f32 %v402, %v405
    %vm407 = vweird.f32 %v401
    %vm408 = vweird.f32 %v402
    %vm409 = vmor %vm407, %vm408
    %v410 = vsel %vm409, %v402, %v406
    %v411 = vand.u32 2147483647, %v401
    %vm412 = vcmp.eq.f32.partialorder %v411, 8.507059e+37
    %v413 = vand.u32 %v401, 2147483648
    %v414 = vor.u32 1.1754944e-38, %v413
    %v415 = vsel %vm412, %v414, %v410
    %v416 = vmul.f32 1.0, %v415
    %v417 = vadd.f32 %v375, %v244
    %v418 = vmul.f32 %v396, %v417
    %v419 = vadd.f32 %v267, %v418
    %v420 = vtanh.pop %v419
    %v421 = vsub.f32 1.0, %v416
    %v422 = vmul.f32 %v421, %v420
    %v423 = vmul.f32 %v416, %v268
    %v424 = vadd.f32 %v422, %v423
    %425 = vst [vmem:[#allocation3] sm:$0xff] %v424
    %s426 = sadd.s32 %s254, 1
    %v427 = vstv %s426
    %vm428 = vcmp.eq.s32.totalorder %v249, %v427
    %v429 = vld [vmem:[#allocation4] sm:$0xff]
    %v430 = vsel %vm428, %v424, %v429
    %431 = vst [vmem:[#allocation4] sm:$0xff] %v430
  $region38: #{name_rnn_forward.1} parent=0 // loop_footer
    %s256 = sadd.s32 %s254, 1
  $region39: #{name_rnn_forward.1} parent=0 // loop_footer_branch
    %253 = sbr.rel target = $region35
  $region40: #{name_rnn_forward.1} parent=0 // loop_exit
    _
  %v432 = vld [vmem:[#allocation4] sm:$0xff]
  %v433 = vld [vmem:[%s6] sm:$0xff]
  %v434 = vld [vmem:[%s6 + $0x8] sm:$0xff]
  %v435 = vld [vmem:[%s6 + $0x10] sm:$0xff]
  %v436 = vld [vmem:[%s6 + $0x18] sm:$0xff]
  %v437 = vld [vmem:[%s6 + $0x20] sm:$0xff]
  %v438 = vld [vmem:[%s6 + $0x28] sm:$0xff]
  %v439 = vld [vmem:[%s6 + $0x30] sm:$0xff]
  %v440 = vld [vmem:[%s6 + $0x38] sm:$0xff]
  %v441 = vld [vmem:[%s6 + $0x40] sm:$0xff]
  %v442 = vld [vmem:[%s6 + $0x48] sm:$0xff]
  %v443 = vld [vmem:[%s6 + $0x50] sm:$0xff]
  %v444 = vld [vmem:[%s6 + $0x58] sm:$0xff]
  %v445 = vld [vmem:[%s6 + $0x60] sm:$0xff]
  %v446 = vld [vmem:[%s6 + $0x68] sm:$0xff]
  %v447 = vld [vmem:[%s6 + $0x70] sm:$0xff]
  %v448 = vld [vmem:[%s6 + $0x78] sm:$0xff]
  %v449 = vld [vmem:[%s7] sm:$0x1]
  %v451 = vperm.slane %v449, 0
  %453 = vmatpush.msra.mxu0 %v448
  %454 = vmatpush.msra.mxu0 %v447
  %455 = vmatpush.msra.mxu0 %v446
  %456 = vmatpush.msra.mxu0 %v445
  %457 = vmatpush.msra.mxu0 %v444
  %458 = vmatpush.msra.mxu0 %v443
  %459 = vmatpush.msra.mxu0 %v442
  %460 = vmatpush.msra.mxu0 %v441
  %461 = vmatpush.msra.mxu0 %v440
  %462 = vmatpush.msra.mxu0 %v439
  %463 = vmatpush.msra.mxu0 %v438
  %464 = vmatpush.msra.mxu0 %v437
  %465 = vmatpush.msra.mxu0 %v436
  %466 = vmatpush.msra.mxu0 %v435
  %467 = vmatpush.msra.mxu0 %v434
  %468 = vmatpush.msra.mxu0 %v433
  %469 = vmatmul.f32.gmra.mxu0 %v432
  %v470 = vpop.f32.mrf.mxu0
  %v471 = vadd.f32 %v451, %v470
  %472 = vdwg.mxu0
  %473 = vst [vmem:[%s9] sm:$0xff] %v471
  // Predicated region
  $region41: #{name_rnn_forward.1} parent=0 // pred_check
    _
  $region42: #{name_rnn_forward.1} parent=0 // pred_check_branch
    %475 = sbr.rel (0) target = $region44
  $region43: #{name_rnn_forward.1} parent=0 // pred_region
    _
  $region44: #{name_rnn_forward.1} parent=0 // pred_fallthru
    _
  // Predicated region
  $region45: #{name_rnn_forward.1} parent=0 // pred_check
    _
  $region46: #{name_rnn_forward.1} parent=0 // pred_check_branch
    %477 = sbr.rel (0) target = $region48
  $region47: #{name_rnn_forward.1} parent=0 // pred_region
    _
  $region48: #{name_rnn_forward.1} parent=0 // pred_fallthru
    _

</llo_original>
